<compile_context>
chip_gen: v7x
topology: tpu7x:2x2x1
jax: 0.10.0
libtpu: 0.0.40
codegen_flags: <defaults>
</compile_context>

<pallas_src>
import math

import jax
import jax.numpy as jnp
from jax.experimental import pallas as pl
from jax.experimental.pallas import tpu as pltpu


# ----------------------------- kernel ---------------------------------------

def _fused_mask_kernel(feat_ref, mask_ref, edge_ref, feat_out_ref, edge_out_ref):
    # feat_ref     : (TILE_N, LANE_D) tile of (possibly lane-folded) node features
    # mask_ref     : (1, LANE_D) RAW node-feature mask (sigmoid computed here, f32)
    # edge_ref     : (E_ROWS, 128) RAW edge-mask parameter (block-resident)
    # feat_out_ref : (TILE_N, LANE_D)
    # edge_out_ref : (E_ROWS, 128) sigmoid(edge_mask), written once
    m = jax.nn.sigmoid(mask_ref[...].astype(jnp.float32))        # EUP, tiny, per step
    feat_out_ref[...] = (feat_ref[...] * m).astype(feat_out_ref.dtype)

    # Edge sigmoid + store exactly once (block stays resident, written back at end).
    # Requires the grid axis to be "arbitrary" (no megacore sharding of this axis).
    @pl.when(pl.program_id(0) == pl.num_programs(0) - 1)
    def _():
        edge_out_ref[...] = jax.nn.sigmoid(
            edge_ref[...].astype(jnp.float32)).astype(edge_out_ref.dtype)


# ----------------------------- tiling helpers --------------------------------

def _round_up(x: int, m: int) -> int:
    return ((x + m - 1) // m) * m


def _vmem_capacity_bytes() -> int:
    """Best-effort trace-time VMEM capacity query (conservative fallback)."""
    try:
        info = pltpu.get_tpu_info()
        cap = getattr(info, "vmem_capacity_bytes", None)
        if cap:
            return int(cap)
    except Exception:
        pass
    return 64 * 1024 * 1024  # conservative default (v7x per-TC physical)


def _choose_tiling(n_rows: int, lane_d: int, feat_dtype, edge_rows: int):
    """Pick (tile_n, vmem_limit_bytes) accounting for ALL resident VMEM blocks.

    Resident VMEM per step ≈ 4 x feat-tile (2 in + 2 out pipeline buffers)
                           + mask block (2 bufs, 8-sublane padded)
                           + edge in/out blocks (2 + 2 bufs).
    """
    itemsize = jnp.dtype(feat_dtype).itemsize
    vmem_cap = _vmem_capacity_bytes()

    if vmem_cap >= 128 * 1024 * 1024:      # v5e / v6e: plenty of VMEM
        gen_limit = 64 * 1024 * 1024
        max_tile_bytes = 8 * 1024 * 1024
    else:                                   # v7x (64 MiB physical): stay conservative
        gen_limit = 32 * 1024 * 1024
        max_tile_bytes = 6 * 1024 * 1024

    lane_padded = _round_up(lane_d, 128)
    mask_bytes = 2 * 8 * lane_padded * 4                 # (1, lane_d) f32, 2 bufs
    edge_bytes = 4 * edge_rows * 128 * 4                 # in x2 + out x2, f32

    feat_budget = max(gen_limit - mask_bytes - edge_bytes - (2 << 20), 1 << 20)
    tile_bytes = min(max_tile_bytes, feat_budget // 4)   # 2 in + 2 out buffers

    bytes_per_row = lane_padded * itemsize
    rows = max(1, tile_bytes // bytes_per_row)
    tile_n = min(n_rows, rows)
    if tile_n < n_rows:
        align = 8 if itemsize >= 4 else (16 if itemsize == 2 else 32)
        tile_n = max(align, (tile_n // align) * align)

    needed = mask_bytes + edge_bytes + 4 * tile_n * bytes_per_row + (4 << 20)
    vmem_limit = int(min(gen_limit, max(needed, 16 << 20)))
    return tile_n, vmem_limit


# ----------------------------- wrapper ---------------------------------------

def node_explainer_forward(n_feats: jax.Array,
                           edge_mask_param: jax.Array,
                           node_feat_mask: jax.Array,
                           *, tile_n: int | None = None):
    """Pallas version of NodeExplainerModule.forward's mask application.

    Returns (new_n_feats [N, D], edge_mask [E, 1]).
    """
    n, d = n_feats.shape
    e, one = edge_mask_param.shape
    assert one == 1, "edge_mask parameter is expected in shape (E, 1)"

    # --- lane-dense feature layout: fold rows into lanes when D < 128 ----------
    fold = 128 // d if (d < 128 and 128 % d == 0) else 1
    lane_d = d * fold
    n_fold = pl.cdiv(n, fold)
    n_pad = n_fold * fold
    feats2d = n_feats
    if n_pad != n:
        feats2d = jnp.pad(n_feats, ((0, n_pad - n), (0, 0)))
    feats2d = feats2d.reshape(n_fold, lane_d)

    mask_row = node_feat_mask.reshape(1, d)
    if fold > 1:
        mask_row = jnp.tile(mask_row, (1, fold))          # (1, lane_d)

    # --- sublane+lane dense edge layout: (E,1) -> (E_pad/128, 128), E_pad % 1024 == 0
    e_pad = pl.cdiv(e, 1024) * 1024
    edge_flat = edge_mask_param.reshape(e)
    if e_pad != e:
        edge_flat = jnp.pad(edge_flat, (0, e_pad - e))
    e_rows = e_pad // 128
    edge2d = edge_flat.reshape(e_rows, 128)

    if tile_n is None:
        tile_n, vmem_limit = _choose_tiling(n_fold, lane_d, n_feats.dtype, e_rows)
    else:
        _, vmem_limit = _choose_tiling(n_fold, lane_d, n_feats.dtype, e_rows)
    grid = (pl.cdiv(n_fold, tile_n),)

    new_feats2d, edge2d_sig = pl.pallas_call(
        _fused_mask_kernel,
        out_shape=(
            jax.ShapeDtypeStruct((n_fold, lane_d), n_feats.dtype),
            jax.ShapeDtypeStruct((e_rows, 128), edge_mask_param.dtype),
        ),
        grid=grid,
        in_specs=[
            pl.BlockSpec((tile_n, lane_d), lambda i: (i, 0)),
            pl.BlockSpec((1, lane_d), lambda i: (0, 0)),        # resident mask row
            pl.BlockSpec((e_rows, 128), lambda i: (0, 0)),      # resident edge block
        ],
        out_specs=(
            pl.BlockSpec((tile_n, lane_d), lambda i: (i, 0)),
            pl.BlockSpec((e_rows, 128), lambda i: (0, 0)),
        ),
        compiler_params=pltpu.CompilerParams(
            # "arbitrary" is required: the edge write is gated to the last step.
            dimension_semantics=("arbitrary",),
            vmem_limit_bytes=vmem_limit,
        ),
    )(feats2d, mask_row, edge2d)

    new_n_feats = new_feats2d.reshape(n_pad, d)[:n, :]
    edge_mask = edge2d_sig.reshape(e_pad)[:e].reshape(e, 1)
    # TODO(synk): new_logits = self.model(graph, dataset, edge_mask) — external
    # black-box GNN (and DGL graph.ndata mutation), not translatable here.
    return new_n_feats, edge_mask


# ----------------------- deterministic parameter init ------------------------

def init_params(key, num_edges: int, node_feat_dim: int):
    """Mirror NodeExplainerModule.__init__ (init_strategy='normal', mask_bias=False)."""
    k_edge, k_feat = jax.random.split(key)
    relu_gain = math.sqrt(2.0)
    edge_std = relu_gain * math.sqrt(1.0 / num_edges)
    edge_mask_param = 1.0 + edge_std * jax.random.normal(
        k_edge, (num_edges, 1), dtype=jnp.float32)
    node_feat_mask = 1.0 + 0.1 * jax.random.normal(
        k_feat, (node_feat_dim,), dtype=jnp.float32)
    # mask_bias=False -> edge_mask_bias is None
    return edge_mask_param, node_feat_mask


# --------------------------------- main ---------------------------------------

if __name__ == "__main__":
    key = jax.random.PRNGKey(0)

    def _check(num_nodes, node_feat_dim, num_edges, k):
        k_param, k_feat = jax.random.split(k)
        edge_mask_param, node_feat_mask = init_params(k_param, num_edges, node_feat_dim)
        n_feats = jax.random.normal(
            k_feat, (num_nodes, node_feat_dim), dtype=jnp.float32)
        new_n_feats, edge_mask = node_explainer_forward(
            n_feats, edge_mask_param, node_feat_mask)
        jax.block_until_ready((new_n_feats, edge_mask))
        ref_feats = n_feats * jax.nn.sigmoid(node_feat_mask)[None, :]
        ref_edge = jax.nn.sigmoid(edge_mask_param)
        assert new_n_feats.shape == (num_nodes, node_feat_dim)
        assert edge_mask.shape == (num_edges, 1)
        assert jnp.allclose(new_n_feats, ref_feats, atol=1e-6)
        assert jnp.allclose(edge_mask, ref_edge, atol=1e-6)

    k1, k2 = jax.random.split(key)
    # Case 1: D is a multiple of 128 (natural lane-dense layout, no folding).
    _check(num_nodes=64, node_feat_dim=128, num_edges=256, k=k1)
    # Case 2: small D (< 128) exercises lane folding; odd N/E exercise padding.
    _check(num_nodes=10, node_feat_dim=32, num_edges=20, k=k2)

    print("KERNEL_OK")
</pallas_src>

<mosaic_0001>
module attributes {stable_mosaic.version = 11 : i64} {
  func.func @_fused_mask_kernel(%arg0: i32, %arg1: memref<64x128xf32, #tpu.memory_space<vmem>>, %arg2: memref<1x128xf32, #tpu.memory_space<vmem>>, %arg3: memref<8x128xf32, #tpu.memory_space<vmem>>, %arg4: memref<64x128xf32, #tpu.memory_space<vmem>>, %arg5: memref<8x128xf32, #tpu.memory_space<vmem>>) attributes {dimension_semantics = [#tpu.dimension_semantics<arbitrary>], iteration_bounds = array<i64: 1>, scalar_prefetch = 0 : i64, scratch_operands = 0 : i64, tpu.core_type = #tpu.core_type<tc>, window_params = [{transform_indices = @transform_0, window_bounds = array<i64: 64, 128>}, {pipeline_mode = #tpu.pipeline_mode<synchronous>, transform_indices = @transform_1, window_bounds = array<i64: 1, 128>}, {pipeline_mode = #tpu.pipeline_mode<synchronous>, transform_indices = @transform_2, window_bounds = array<i64: 8, 128>}, {transform_indices = @transform_3, window_bounds = array<i64: 64, 128>}, {pipeline_mode = #tpu.pipeline_mode<synchronous>, transform_indices = @transform_4, window_bounds = array<i64: 8, 128>}]} {
    %c0 = arith.constant 0 : index
    %c0_0 = arith.constant 0 : index
    %0 = vector.load %arg2[%c0, %c0_0] : memref<1x128xf32, #tpu.memory_space<vmem>>, vector<1x128xf32>
    %1 = arith.negf %0 : vector<1x128xf32>
    %2 = math.exp %1 : vector<1x128xf32>
    %cst = arith.constant 1.000000e+00 : f32
    %3 = vector.broadcast %cst : f32 to vector<1x128xf32>
    %4 = arith.addf %3, %2 : vector<1x128xf32>
    %5 = arith.divf %3, %4 : vector<1x128xf32>
    %c0_1 = arith.constant 0 : index
    %c0_2 = arith.constant 0 : index
    %6 = vector.load %arg1[%c0_1, %c0_2] : memref<64x128xf32, #tpu.memory_space<vmem>>, vector<64x128xf32>
    %7 = vector.broadcast %5 : vector<1x128xf32> to vector<64x128xf32>
    %8 = arith.mulf %6, %7 : vector<64x128xf32>
    %c0_3 = arith.constant 0 : index
    %c0_4 = arith.constant 0 : index
    %9 = vector.load %arg4[%c0_3, %c0_4] : memref<64x128xf32, #tpu.memory_space<vmem>>, vector<64x128xf32>
    tpu.vector_store %arg4[%c0_3, %c0_4], %8 {strides = array<i32>} : memref<64x128xf32, #tpu.memory_space<vmem>>, vector<64x128xf32>,
    %c0_i32 = arith.constant 0 : i32
    %10 = arith.cmpi eq, %arg0, %c0_i32 : i32
    %11 = arith.extui %10 : i1 to i32
    %c0_i32_5 = arith.constant 0 : i32
    %12 = arith.cmpi ne, %11, %c0_i32_5 : i32
    scf.if %12 {
      %c0_6 = arith.constant 0 : index
      %c0_7 = arith.constant 0 : index
      %13 = vector.load %arg3[%c0_6, %c0_7] : memref<8x128xf32, #tpu.memory_space<vmem>>, vector<8x128xf32>
      %14 = arith.negf %13 : vector<8x128xf32>
      %15 = math.exp %14 : vector<8x128xf32>
      %cst_8 = arith.constant 1.000000e+00 : f32
      %16 = vector.broadcast %cst_8 : f32 to vector<8x128xf32>
      %17 = arith.addf %16, %15 : vector<8x128xf32>
      %18 = arith.divf %16, %17 : vector<8x128xf32>
      %c0_9 = arith.constant 0 : index
      %c0_10 = arith.constant 0 : index
      %19 = vector.load %arg5[%c0_9, %c0_10] : memref<8x128xf32, #tpu.memory_space<vmem>>, vector<8x128xf32>
      tpu.vector_store %arg5[%c0_9, %c0_10], %18 {strides = array<i32>} : memref<8x128xf32, #tpu.memory_space<vmem>>, vector<8x128xf32>,
    } else {
    }
    return
  }
  func.func @transform_0(%arg0: i32) -> (i32, i32) {
    %c0_i32 = arith.constant 0 : i32
    %c0_i32_0 = arith.constant 0 : i32
    return %arg0, %c0_i32 : i32, i32
  }
  func.func @transform_1(%arg0: i32) -> (i32, i32) {
    %c0_i32 = arith.constant 0 : i32
    %c0_i32_0 = arith.constant 0 : i32
    %c0_i32_1 = arith.constant 0 : i32
    return %c0_i32, %c0_i32_0 : i32, i32
  }
  func.func @transform_2(%arg0: i32) -> (i32, i32) {
    %c0_i32 = arith.constant 0 : i32
    %c0_i32_0 = arith.constant 0 : i32
    %c0_i32_1 = arith.constant 0 : i32
    return %c0_i32, %c0_i32_0 : i32, i32
  }
  func.func @transform_3(%arg0: i32) -> (i32, i32) {
    %c0_i32 = arith.constant 0 : i32
    %c0_i32_0 = arith.constant 0 : i32
    return %arg0, %c0_i32 : i32, i32
  }
  func.func @transform_4(%arg0: i32) -> (i32, i32) {
    %c0_i32 = arith.constant 0 : i32
    %c0_i32_0 = arith.constant 0 : i32
    %c0_i32_1 = arith.constant 0 : i32
    return %c0_i32, %c0_i32_0 : i32, i32
  }
}

</mosaic_0001>

<llo_original>
// kernel: tpu_custom_call.1
$region0: #{tpu_custom_call.1}
  #allocation0 [shape = 'u32[]', space=smem, size = 0x4, offset = 0x4, fixed_abs, tag = 'smem constant byte address 0x4 - core index']
  #allocation1 [shape = 'u32[144,128]{1,0:T(1,128)}', space=vmem, size = 0x12000, scoped, tag = 'internal scratch']
  %s0 = inlined_call_operand.hbm [shape: f32[64,128], index: 0, kind: input, shape index: {}]
  %s1 = inlined_call_operand.vmem [shape: f32[1,128], index: 1, kind: input, shape index: {}]
  %s2 = inlined_call_operand.hbm [shape: f32[8,128], index: 2, kind: input, shape index: {}]
  %s3 = inlined_call_operand.hbm [shape: f32[64,128], index: 3, kind: output, shape index: {0}]
  %s4 = inlined_call_operand.hbm [shape: f32[8,128], index: 4, kind: output, shape index: {1}]
  %5 = xla_tuple %s3, %s4
  %s6 = sld [smem:[#allocation0]]
  $region42: #{tpu_custom_call.1} parent=0
    _
  %s8 = ssub.s32 1, %s6
  %s9 = scalar_select 0, %s8, %s6
  $region1: #{tpu_custom_call.1} parent=0
    #allocation2 [shape = 'u8[32768]{0}', space=vmem, size = 0x8000, scoped, tag = 'input window, operand 0, single buffered']
    #allocation3 [shape = 's32[1]{0}', space=sflag, size = 0x4, scoped, tag = 'scoped memory for tpu_custom_call.1']
    #allocation4 [shape = 's32[1]{0}', space=sflag, size = 0x4, scoped, tag = 'scoped memory for tpu_custom_call.1']
    #allocation5 [shape = 'u8[4096]{0}', space=vmem, size = 0x1000, scoped, tag = 'input window, operand 2, single buffered']
    #allocation6 [shape = 's32[1]{0}', space=sflag, size = 0x4, scoped, tag = 'scoped memory for tpu_custom_call.1']
    #allocation7 [shape = 'u8[32768]{0}', space=vmem, size = 0x8000, scoped, tag = 'output window, operand 0, single buffered']
    #allocation8 [shape = 'u8[4096]{0}', space=vmem, size = 0x1000, scoped, tag = 'output window, operand 1, single buffered']
    #allocation9 [shape = 's32[1]{0}', space=sflag, size = 0x4, scoped, tag = 'scoped memory for tpu_custom_call.1']
    %10 = vsyncpa [#allocation3], 0
    %11 = vsyncpa [#allocation6], 0
    %12 = vsyncpa [#allocation4], 0
    %13 = vsyncpa [#allocation9], 0
    // Predicated region
    $region2: #{tpu_custom_call.1} parent=1 // pred_check
      _
    $region3: #{tpu_custom_call.1} parent=1 // pred_check_branch
      %15 = sbr.rel (0) target = $region5
    $region4: #{tpu_custom_call.1} parent=1 // pred_region
      %s17 = ssub.s32 1024, 1024
      %18 = vsyncadd [#allocation3], %s17
      %s19 = sshll.u32 [#allocation2], 4
      %s20 = int_to_ptr.vmem [resolvable:$true] %s19
      %25 = dma.hbm_to_vmem [thread:$0]  %s0, 1024, %s20, [#allocation3], 128, 128, 8
    $region5: #{tpu_custom_call.1} parent=1 // pred_fallthru
      _
    // Predicated region
    $region6: #{tpu_custom_call.1} parent=1 // pred_check
      _
    $region7: #{tpu_custom_call.1} parent=1 // pred_check_branch
      %27 = sbr.rel (0) target = $region9
    $region8: #{tpu_custom_call.1} parent=1 // pred_region
      _
    $region9: #{tpu_custom_call.1} parent=1 // pred_fallthru
      _
    // Predicated region
    $region10: #{tpu_custom_call.1} parent=1 // pred_check
      _
    $region11: #{tpu_custom_call.1} parent=1 // pred_check_branch
      %29 = sbr.rel (0) target = $region13
    $region12: #{tpu_custom_call.1} parent=1 // pred_region
      %s31 = ssub.s32 128, 128
      %32 = vsyncadd [#allocation6], %s31
      %s34 = sshll.u32 [#allocation5], 4
      %s35 = int_to_ptr.vmem [resolvable:$true] %s34
      %37 = dma.hbm_to_vmem [thread:$0]  %s2, 128, %s35, [#allocation6]
    $region13: #{tpu_custom_call.1} parent=1 // pred_fallthru
      _
    // Predicated region
    $region14: #{tpu_custom_call.1} parent=1 // pred_check
      _
    $region15: #{tpu_custom_call.1} parent=1 // pred_check_branch
      %39 = sbr.rel (0) target = $region17
    $region16: #{tpu_custom_call.1} parent=1 // pred_region
      %40 = dma.done [#allocation3], 1024
    $region17: #{tpu_custom_call.1} parent=1 // pred_fallthru
      _
    // Predicated region
    $region18: #{tpu_custom_call.1} parent=1 // pred_check
      _
    $region19: #{tpu_custom_call.1} parent=1 // pred_check_branch
      %42 = sbr.rel (0) target = $region21
    $region20: #{tpu_custom_call.1} parent=1 // pred_region
      %43 = dma.done [#allocation6], 128
    $region21: #{tpu_custom_call.1} parent=1 // pred_fallthru
      _
    %v44 = vld [vmem:[%s1] sm:$0x1]
    %v45 = vxor.u32 %v44, 2147483648
    %v46 = vmul.f32 %v45, 1.442695
    %v47 = vpow.pop %v46
    %v48 = vadd.f32 %v47, 1.0
    %v49 = vrcp.pop %v48
    %v50 = vmul.f32 1.0, %v49
    %v51 = vld [vmem:[#allocation2] sm:$0xff]
    %v52 = vld [vmem:[#allocation2 + $0x8] sm:$0xff]
    %v53 = vld [vmem:[#allocation2 + $0x10] sm:$0xff]
    %v54 = vld [vmem:[#allocation2 + $0x18] sm:$0xff]
    %v55 = vld [vmem:[#allocation2 + $0x20] sm:$0xff]
    %v56 = vld [vmem:[#allocation2 + $0x28] sm:$0xff]
    %v57 = vld [vmem:[#allocation2 + $0x30] sm:$0xff]
    %v58 = vld [vmem:[#allocation2 + $0x38] sm:$0xff]
    %v60 = vlaneseq
    %v61 = vshrl.u32 %v60, 7
    %v62 = vsub.s32 0, %v61
    %v63 = vrot.slane %v50, %v62
    %v65 = vmul.f32 %v51, %v63
    %v66 = vmul.f32 %v52, %v63
    %v67 = vmul.f32 %v53, %v63
    %v68 = vmul.f32 %v54, %v63
    %v69 = vmul.f32 %v55, %v63
    %v70 = vmul.f32 %v56, %v63
    %v71 = vmul.f32 %v57, %v63
    %v72 = vmul.f32 %v58, %v63
    %73 = vst [vmem:[#allocation7] sm:$0xff] %v65
    %74 = vst [vmem:[#allocation7 + $0x8] sm:$0xff] %v66
    %75 = vst [vmem:[#allocation7 + $0x10] sm:$0xff] %v67
    %76 = vst [vmem:[#allocation7 + $0x18] sm:$0xff] %v68
    %77 = vst [vmem:[#allocation7 + $0x20] sm:$0xff] %v69
    %78 = vst [vmem:[#allocation7 + $0x28] sm:$0xff] %v70
    %79 = vst [vmem:[#allocation7 + $0x30] sm:$0xff] %v71
    %80 = vst [vmem:[#allocation7 + $0x38] sm:$0xff] %v72
    %p81 = scmp.eq.s32.totalorder 0, 0
    // Predicated region
    $region22: #{tpu_custom_call.1} parent=1 // pred_check
      %p82 = pneg %p81
    $region23: #{tpu_custom_call.1} parent=1 // pred_check_branch
      %84 = sbr.rel (%p82) target = $region25
    $region24: #{tpu_custom_call.1} parent=1 // pred_region
      %v85 = vld [vmem:[#allocation5] sm:$0xff]
      %v86 = vxor.u32 %v85, 2147483648
      %v87 = vmul.f32 %v86, 1.442695
      %v88 = vpow.pop %v87
      %v89 = vadd.f32 %v88, 1.0
      %v90 = vrcp.pop %v89
      %v91 = vmul.f32 1.0, %v90
      %92 = vst [vmem:[#allocation8] sm:$0xff] %v91
    $region25: #{tpu_custom_call.1} parent=1 // pred_fallthru
      _
    // Predicated region
    $region26: #{tpu_custom_call.1} parent=1 // pred_check
      _
    $region27: #{tpu_custom_call.1} parent=1 // pred_check_branch
      %94 = sbr.rel (0) target = $region29
    $region28: #{tpu_custom_call.1} parent=1 // pred_region
      %s96 = ssub.s32 1024, 1024
      %97 = vsyncadd [#allocation4], %s96
      %s98 = sshll.u32 [#allocation7], 4
      %s99 = int_to_ptr.vmem [resolvable:$true] %s98
      %104 = dma.vmem_to_hbm [thread:$0]  %s99, 1024, %s3, [#allocation4], 128, 128, 8
    $region29: #{tpu_custom_call.1} parent=1 // pred_fallthru
      _
    // Predicated region
    $region30: #{tpu_custom_call.1} parent=1 // pred_check
      _
    $region31: #{tpu_custom_call.1} parent=1 // pred_check_branch
      %106 = sbr.rel (0) target = $region33
    $region32: #{tpu_custom_call.1} parent=1 // pred_region
      %s108 = ssub.s32 128, 128
      %109 = vsyncadd [#allocation9], %s108
      %s111 = sshll.u32 [#allocation8], 4
      %s112 = int_to_ptr.vmem [resolvable:$true] %s111
      %114 = dma.vmem_to_hbm [thread:$0]  %s112, 128, %s4, [#allocation9]
    $region33: #{tpu_custom_call.1} parent=1 // pred_fallthru
      _
    // Predicated region
    $region34: #{tpu_custom_call.1} parent=1 // pred_check
      _
    $region35: #{tpu_custom_call.1} parent=1 // pred_check_branch
      %116 = sbr.rel (0) target = $region37
    $region36: #{tpu_custom_call.1} parent=1 // pred_region
      %117 = dma.done [#allocation4], 1024
    $region37: #{tpu_custom_call.1} parent=1 // pred_fallthru
      _
    // Predicated region
    $region38: #{tpu_custom_call.1} parent=1 // pred_check
      _
    $region39: #{tpu_custom_call.1} parent=1 // pred_check_branch
      %119 = sbr.rel (0) target = $region41
    $region40: #{tpu_custom_call.1} parent=1 // pred_region
      %120 = dma.done [#allocation9], 128
    $region41: #{tpu_custom_call.1} parent=1 // pred_fallthru
      _
    %121 = vsyncpa [#allocation3], 1
    %122 = vsyncpa [#allocation6], 1
    %123 = vsyncpa [#allocation4], 1
    %124 = vsyncpa [#allocation9], 1

</llo_original>
